<compile_context>
chip_gen: v6e
topology: v6e:2x2x1
jax: 0.10.0
libtpu: 0.0.40
codegen_flags: <defaults>
</compile_context>

<pallas_src>
import jax
import jax.numpy as jnp
from jax.experimental import pallas as pl
from jax.experimental.pallas import tpu as pltpu


def _saturation_kernel(s_ref, x_ref, o_ref):
    # s_ref: (1,) f32 scalar in SMEM.
    # x_ref / o_ref: (Nb, 3, Rb, 128) or (Nb, 3, P) VMEM tiles; channel = dim 1.
    s = s_ref[0]
    r = x_ref[:, 0].astype(jnp.float32)
    g = x_ref[:, 1].astype(jnp.float32)
    b = x_ref[:, 2].astype(jnp.float32)
    # torch.mean(image * [0.3, 0.6, 0.1], dim=1) with the 1/3 folded into the weights.
    lum = r * 0.1 + g * 0.2 + b * (1.0 / 30.0)
    # Hoist the scalar broadcast once (JAX does not CSE broadcast_in_dim).
    s_vec = jnp.full(lum.shape, s, dtype=jnp.float32)
    # (1 - s) * c + s * lum  ==  c + s * (lum - c): one mul/add/sub per channel,
    # each channel written exactly once from a fully-formed value.
    o_ref[:, 0] = (r + s_vec * (lum - r)).astype(o_ref.dtype)
    o_ref[:, 1] = (g + s_vec * (lum - g)).astype(o_ref.dtype)
    o_ref[:, 2] = (b + s_vec * (lum - b)).astype(o_ref.dtype)
    # NOTE: the PyTorch code calls `image.clamp(-1, 1)` without assigning the
    # result, so it is a no-op; we faithfully do not clamp here.


def _largest_divisor(n: int, limit: int, quantum: int = 1) -> int:
    """Largest d with d | n, d <= limit, d % quantum == 0.  Returns 0 if none."""
    best = 0
    d = 1
    while d * d <= n:
        if n % d == 0:
            for c in (d, n // d):
                if c <= limit and c % quantum == 0 and c > best:
                    best = c
        d += 1
    return best


_TARGET_BLOCK_BYTES = 1 << 20  # ~1 MiB per input block (good HBM-roofline point)


def saturation(image: jax.Array, rnd_sat) -> jax.Array:
    """Pallas TPU implementation of Saturation.forward (NCHW, C == 3)."""
    N, C, H, W = image.shape
    assert C == 3, "Saturation expects 3-channel (RGB) input"
    P = H * W
    elem = jnp.dtype(image.dtype).itemsize
    s = jnp.asarray(rnd_sat, jnp.float32).reshape((1,))

    if P % 128 == 0:
        # Lane-dense layout: (N, 3, R, 128), R = H*W/128.
        R = P // 128
        x = image.reshape(N, C, R, 128)
        row_bytes = C * 128 * elem
        max_rows = max(1, _TARGET_BLOCK_BYTES // row_bytes)
        if R <= max_rows:
            Rb = R                                   # whole image per step
        else:
            Rb = _largest_divisor(R, max_rows, quantum=8)
            if Rb == 0:                              # no mult-of-8 divisor fits
                Rb = R
        if Rb == R:
            # Tiny images: pack several images per step to amortize ~0.35us/step.
            img_bytes = C * R * 128 * elem
            Nb = max(1, _largest_divisor(N, max(1, _TARGET_BLOCK_BYTES // img_bytes)))
        else:
            Nb = 1
        grid = (N // Nb, R // Rb)
        block = (Nb, C, Rb, 128)
        in_spec = pl.BlockSpec(block, lambda n, p: (n, 0, p, 0))
        out_spec = pl.BlockSpec(block, lambda n, p: (n, 0, p, 0))
        out_shape = jax.ShapeDtypeStruct((N, C, R, 128), image.dtype)
        dims = ("parallel", "parallel")
    else:
        # Fallback: lane dim must equal the full flattened spatial extent to stay
        # legal; tile over batch only.
        # TODO(synk): pad H*W up to a multiple of 128 for very large odd-sized
        # images so the block can still be spatially tiled.
        x = image.reshape(N, C, P)
        img_bytes = C * P * elem
        Nb = max(1, _largest_divisor(N, max(1, _TARGET_BLOCK_BYTES // img_bytes)))
        grid = (N // Nb,)
        block = (Nb, C, P)
        in_spec = pl.BlockSpec(block, lambda n: (n, 0, 0))
        out_spec = pl.BlockSpec(block, lambda n: (n, 0, 0))
        out_shape = jax.ShapeDtypeStruct((N, C, P), image.dtype)
        dims = ("parallel",)

    out = pl.pallas_call(
        _saturation_kernel,
        out_shape=out_shape,
        grid=grid,
        in_specs=[
            pl.BlockSpec(memory_space=pltpu.MemorySpace.SMEM),  # rnd_sat scalar
            in_spec,
        ],
        out_specs=out_spec,
        compiler_params=pltpu.CompilerParams(dimension_semantics=dims),
    )(s, x)
    return out.reshape(N, C, H, W)


if __name__ == "__main__":
    key = jax.random.PRNGKey(0)
    k_sat, k_img = jax.random.split(key)

    # Deterministic stand-in for `torch.rand(1)[0] * 1.0 * rnd_sat` with rnd_sat=1.0
    rnd_sat = jax.random.uniform(k_sat, (), jnp.float32) * 1.0 * 1.0

    # Small NCHW input consistent with the module (3 channels required).
    image = jax.random.uniform(k_img, (2, 3, 16, 16), jnp.float32,
                               minval=-1.0, maxval=1.0)

    out = saturation(image, rnd_sat)
    out = jax.block_until_ready(out)

    # Pure-JAX reference check.
    sat_w = jnp.array([0.3, 0.6, 0.1], jnp.float32).reshape(1, 3, 1, 1)
    lum = jnp.mean(image * sat_w, axis=1, keepdims=True)
    ref = (1.0 - rnd_sat) * image + rnd_sat * lum
    assert jnp.allclose(out, ref, atol=1e-5, rtol=1e-5)

    print("KERNEL_OK")
</pallas_src>

<mosaic_0001>
module attributes {stable_mosaic.version = 11 : i64} {
  func.func @_saturation_kernel(%arg0: i32, %arg1: i32, %arg2: memref<1xf32, #tpu.memory_space<smem>>, %arg3: memref<2x3x2x128xf32, #tpu.memory_space<vmem>>, %arg4: memref<2x3x2x128xf32, #tpu.memory_space<vmem>>) attributes {dimension_semantics = [#tpu.dimension_semantics<parallel>, #tpu.dimension_semantics<parallel>], iteration_bounds = array<i64: 1, 1>, scalar_prefetch = 0 : i64, scratch_operands = 0 : i64, tpu.core_type = #tpu.core_type<tc>, window_params = [{transform_indices = @transform_0, window_bounds = array<i64: 1>}, {transform_indices = @transform_1, window_bounds = array<i64: 2, 3, 2, 128>}, {transform_indices = @transform_2, window_bounds = array<i64: 2, 3, 2, 128>}]} {
    %c0 = arith.constant 0 : index
    %0 = memref.load %arg2[%c0] : memref<1xf32, #tpu.memory_space<smem>>
    %c0_0 = arith.constant 0 : index
    %c0_1 = arith.constant 0 : index
    %c0_2 = arith.constant 0 : index
    %c0_3 = arith.constant 0 : index
    %1 = vector.load %arg3[%c0_0, %c0_1, %c0_2, %c0_3] : memref<2x3x2x128xf32, #tpu.memory_space<vmem>>, vector<2x1x2x128xf32>
    %2 = vector.shape_cast %1 : vector<2x1x2x128xf32> to vector<2x2x128xf32>
    %c0_4 = arith.constant 0 : index
    %c1 = arith.constant 1 : index
    %c0_5 = arith.constant 0 : index
    %c0_6 = arith.constant 0 : index
    %3 = vector.load %arg3[%c0_4, %c1, %c0_5, %c0_6] : memref<2x3x2x128xf32, #tpu.memory_space<vmem>>, vector<2x1x2x128xf32>
    %4 = vector.shape_cast %3 : vector<2x1x2x128xf32> to vector<2x2x128xf32>
    %c0_7 = arith.constant 0 : index
    %c2 = arith.constant 2 : index
    %c0_8 = arith.constant 0 : index
    %c0_9 = arith.constant 0 : index
    %5 = vector.load %arg3[%c0_7, %c2, %c0_8, %c0_9] : memref<2x3x2x128xf32, #tpu.memory_space<vmem>>, vector<2x1x2x128xf32>
    %6 = vector.shape_cast %5 : vector<2x1x2x128xf32> to vector<2x2x128xf32>
    %cst = arith.constant 1.000000e-01 : f32
    %7 = vector.broadcast %cst : f32 to vector<2x2x128xf32>
    %8 = arith.mulf %2, %7 : vector<2x2x128xf32>
    %cst_10 = arith.constant 2.000000e-01 : f32
    %9 = vector.broadcast %cst_10 : f32 to vector<2x2x128xf32>
    %10 = arith.mulf %4, %9 : vector<2x2x128xf32>
    %11 = arith.addf %8, %10 : vector<2x2x128xf32>
    %cst_11 = arith.constant 0.0333333351 : f32
    %12 = vector.broadcast %cst_11 : f32 to vector<2x2x128xf32>
    %13 = arith.mulf %6, %12 : vector<2x2x128xf32>
    %14 = arith.addf %11, %13 : vector<2x2x128xf32>
    %15 = vector.broadcast %0 : f32 to vector<2x2x128xf32>
    %16 = arith.subf %14, %2 : vector<2x2x128xf32>
    %17 = arith.mulf %15, %16 : vector<2x2x128xf32>
    %18 = arith.addf %2, %17 : vector<2x2x128xf32>
    %c0_12 = arith.constant 0 : index
    %c0_13 = arith.constant 0 : index
    %c0_14 = arith.constant 0 : index
    %c0_15 = arith.constant 0 : index
    %19 = vector.load %arg4[%c0_12, %c0_13, %c0_14, %c0_15] : memref<2x3x2x128xf32, #tpu.memory_space<vmem>>, vector<2x1x2x128xf32>
    %20 = vector.shape_cast %19 : vector<2x1x2x128xf32> to vector<2x2x128xf32>
    %21 = vector.shape_cast %18 : vector<2x2x128xf32> to vector<2x1x2x128xf32>
    tpu.vector_store %arg4[%c0_12, %c0_13, %c0_14, %c0_15], %21 {strides = array<i32>} : memref<2x3x2x128xf32, #tpu.memory_space<vmem>>, vector<2x1x2x128xf32>,
    %22 = arith.subf %14, %4 : vector<2x2x128xf32>
    %23 = arith.mulf %15, %22 : vector<2x2x128xf32>
    %24 = arith.addf %4, %23 : vector<2x2x128xf32>
    %c0_16 = arith.constant 0 : index
    %c1_17 = arith.constant 1 : index
    %c0_18 = arith.constant 0 : index
    %c0_19 = arith.constant 0 : index
    %25 = vector.load %arg4[%c0_16, %c1_17, %c0_18, %c0_19] : memref<2x3x2x128xf32, #tpu.memory_space<vmem>>, vector<2x1x2x128xf32>
    %26 = vector.shape_cast %25 : vector<2x1x2x128xf32> to vector<2x2x128xf32>
    %27 = vector.shape_cast %24 : vector<2x2x128xf32> to vector<2x1x2x128xf32>
    tpu.vector_store %arg4[%c0_16, %c1_17, %c0_18, %c0_19], %27 {strides = array<i32>} : memref<2x3x2x128xf32, #tpu.memory_space<vmem>>, vector<2x1x2x128xf32>,
    %28 = arith.subf %14, %6 : vector<2x2x128xf32>
    %29 = arith.mulf %15, %28 : vector<2x2x128xf32>
    %30 = arith.addf %6, %29 : vector<2x2x128xf32>
    %c0_20 = arith.constant 0 : index
    %c2_21 = arith.constant 2 : index
    %c0_22 = arith.constant 0 : index
    %c0_23 = arith.constant 0 : index
    %31 = vector.load %arg4[%c0_20, %c2_21, %c0_22, %c0_23] : memref<2x3x2x128xf32, #tpu.memory_space<vmem>>, vector<2x1x2x128xf32>
    %32 = vector.shape_cast %31 : vector<2x1x2x128xf32> to vector<2x2x128xf32>
    %33 = vector.shape_cast %30 : vector<2x2x128xf32> to vector<2x1x2x128xf32>
    tpu.vector_store %arg4[%c0_20, %c2_21, %c0_22, %c0_23], %33 {strides = array<i32>} : memref<2x3x2x128xf32, #tpu.memory_space<vmem>>, vector<2x1x2x128xf32>,
    return
  }
  func.func @transform_0(%arg0: i32, %arg1: i32) -> i32 {
    %c0_i32 = arith.constant 0 : i32
    %c0_i32_0 = arith.constant 0 : i32
    return %c0_i32 : i32
  }
  func.func @transform_1(%arg0: i32, %arg1: i32) -> (i32, i32, i32, i32) {
    %c0_i32 = arith.constant 0 : i32
    %c0_i32_0 = arith.constant 0 : i32
    %c0_i32_1 = arith.constant 0 : i32
    return %arg0, %c0_i32, %arg1, %c0_i32_0 : i32, i32, i32, i32
  }
  func.func @transform_2(%arg0: i32, %arg1: i32) -> (i32, i32, i32, i32) {
    %c0_i32 = arith.constant 0 : i32
    %c0_i32_0 = arith.constant 0 : i32
    %c0_i32_1 = arith.constant 0 : i32
    return %arg0, %c0_i32, %arg1, %c0_i32_0 : i32, i32, i32, i32
  }
}

</mosaic_0001>

<llo_original>
// kernel: tpu_custom_call.1
$region0: #{tpu_custom_call.1}
  #allocation0 [shape = 'u32[]', space=smem, size = 0x4, offset = 0x4, fixed_abs, tag = 'smem constant byte address 0x4 - core index']
  #allocation1 [shape = 'u32[144,128]{1,0:T(1,128)}', space=vmem, size = 0x12000, scoped, tag = 'internal scratch']
  #allocation2 [shape = 'f32[1]{0:T(128)S(6)}', space=smem, size = 0x200, scoped, tag = 'scoped memory for tpu_custom_call.1']
  %s0 = inlined_call_operand.<no memory space> [shape: f32[1], index: 0, kind: input, shape index: {}]
  %s1 = inlined_call_operand.hbm [shape: f32[2,3,2,128], index: 1, kind: input, shape index: {}]
  %s2 = inlined_call_operand.hbm [shape: f32[2,3,2,128], index: 2, kind: output, shape index: {}]
  %s3 = sld [smem:[#allocation0]]
  $region22: #{tpu_custom_call.1} parent=0
    _
  %s5 = ssub.s32 1, %s3
  %s6 = scalar_select 0, %s5, %s3
  %7 = sst [smem:[#allocation2]] %s0
  $region1: #{tpu_custom_call.1} parent=0
    #allocation3 [shape = 'u8[6144]{0}', space=vmem, size = 0x1800, scoped, tag = 'input window, operand 1, single buffered']
    #allocation4 [shape = 's32[1]{0}', space=sflag, size = 0x4, scoped, tag = 'scoped memory for tpu_custom_call.1']
    #allocation5 [shape = 's32[1]{0}', space=sflag, size = 0x4, scoped, tag = 'scoped memory for tpu_custom_call.1']
    #allocation6 [shape = 'u8[6144]{0}', space=vmem, size = 0x1800, scoped, tag = 'output window, operand 0, single buffered']
    %8 = vsyncpa [#allocation4], 0
    %9 = vsyncpa [#allocation5], 0
    // Predicated region
    $region2: #{tpu_custom_call.1} parent=1 // pred_check
      _
    $region3: #{tpu_custom_call.1} parent=1 // pred_check_branch
      %11 = sbr.rel (0) target = $region5
    $region4: #{tpu_custom_call.1} parent=1 // pred_region
      _
    $region5: #{tpu_custom_call.1} parent=1 // pred_fallthru
      _
    // Predicated region
    $region6: #{tpu_custom_call.1} parent=1 // pred_check
      _
    $region7: #{tpu_custom_call.1} parent=1 // pred_check_branch
      %13 = sbr.rel (0) target = $region9
    $region8: #{tpu_custom_call.1} parent=1 // pred_region
      %s15 = ssub.s32 192, 192
      %16 = vsyncadd [#allocation4], %s15
      %s17 = sshll.u32 [#allocation3], 4
      %s18 = int_to_ptr.vmem [resolvable:$true] %s17
      %23 = dma.hbm_to_vmem [thread:$0]  %s1, 192, %s18, [#allocation4], 32, 32, 2
    $region9: #{tpu_custom_call.1} parent=1 // pred_fallthru
      _
    // Predicated region
    $region10: #{tpu_custom_call.1} parent=1 // pred_check
      _
    $region11: #{tpu_custom_call.1} parent=1 // pred_check_branch
      %25 = sbr.rel (0) target = $region13
    $region12: #{tpu_custom_call.1} parent=1 // pred_region
      %26 = dma.done [#allocation4], 192
    $region13: #{tpu_custom_call.1} parent=1 // pred_fallthru
      _
    %s27 = sld [smem:[#allocation2]]
    %v28 = vld [vmem:[#allocation3] sm:$0x3]
    %v29 = vld [vmem:[#allocation3 + $0x6] sm:$0x3]
    %s30 = scalar_lea.vmem [#allocation3], 2
    %v31 = vld [vmem:[%s30] sm:$0x3]
    %v32 = vld [vmem:[%s30 + $0x6] sm:$0x3]
    %s33 = scalar_lea.vmem [#allocation3], 4
    %v34 = vld [vmem:[%s33] sm:$0x3]
    %v35 = vld [vmem:[%s33 + $0x6] sm:$0x3]
    %v36 = vmul.f32 %v28, 0.1
    %v37 = vmul.f32 %v29, 0.1
    %v38 = vmul.f32 %v31, 0.2
    %v39 = vmul.f32 %v32, 0.2
    %v40 = vadd.f32 %v36, %v38
    %v41 = vadd.f32 %v37, %v39
    %v42 = vmul.f32 %v34, 0.033333335
    %v43 = vmul.f32 %v35, 0.033333335
    %v44 = vadd.f32 %v40, %v42
    %v45 = vadd.f32 %v41, %v43
    %v46 = vstv %s27
    %v47 = vsub.f32 %v44, %v28
    %v48 = vsub.f32 %v45, %v29
    %v49 = vmul.f32 %v46, %v47
    %v50 = vmul.f32 %v46, %v48
    %v51 = vadd.f32 %v28, %v49
    %v52 = vadd.f32 %v29, %v50
    %53 = vst [vmem:[#allocation6] sm:$0x3] %v51
    %54 = vst [vmem:[#allocation6 + $0x6] sm:$0x3] %v52
    %v55 = vsub.f32 %v44, %v31
    %v56 = vsub.f32 %v45, %v32
    %v57 = vmul.f32 %v46, %v55
    %v58 = vmul.f32 %v46, %v56
    %v59 = vadd.f32 %v31, %v57
    %v60 = vadd.f32 %v32, %v58
    %s61 = scalar_lea.vmem [#allocation6], 2
    %62 = vst [vmem:[%s61] sm:$0x3] %v59
    %63 = vst [vmem:[%s61 + $0x6] sm:$0x3] %v60
    %v64 = vsub.f32 %v44, %v34
    %v65 = vsub.f32 %v45, %v35
    %v66 = vmul.f32 %v46, %v64
    %v67 = vmul.f32 %v46, %v65
    %v68 = vadd.f32 %v34, %v66
    %v69 = vadd.f32 %v35, %v67
    %s70 = scalar_lea.vmem [#allocation6], 4
    %71 = vst [vmem:[%s70] sm:$0x3] %v68
    %72 = vst [vmem:[%s70 + $0x6] sm:$0x3] %v69
    // Predicated region
    $region14: #{tpu_custom_call.1} parent=1 // pred_check
      _
    $region15: #{tpu_custom_call.1} parent=1 // pred_check_branch
      %74 = sbr.rel (0) target = $region17
    $region16: #{tpu_custom_call.1} parent=1 // pred_region
      %s76 = ssub.s32 192, 192
      %77 = vsyncadd [#allocation5], %s76
      %s78 = sshll.u32 [#allocation6], 4
      %s79 = int_to_ptr.vmem [resolvable:$true] %s78
      %84 = dma.vmem_to_hbm [thread:$0]  %s79, 192, %s2, [#allocation5], 32, 32, 2
    $region17: #{tpu_custom_call.1} parent=1 // pred_fallthru
      _
    // Predicated region
    $region18: #{tpu_custom_call.1} parent=1 // pred_check
      _
    $region19: #{tpu_custom_call.1} parent=1 // pred_check_branch
      %86 = sbr.rel (0) target = $region21
    $region20: #{tpu_custom_call.1} parent=1 // pred_region
      %87 = dma.done [#allocation5], 192
    $region21: #{tpu_custom_call.1} parent=1 // pred_fallthru
      _
    %88 = vsyncpa [#allocation4], 1
    %89 = vsyncpa [#allocation5], 1

</llo_original>
